<compile_context>
chip_gen: v7x
topology: tpu7x:2x2x1
jax: 0.10.0
libtpu: 0.0.40
codegen_flags: <defaults>
</compile_context>

<pallas_src>
import jax
import jax.numpy as jnp
from jax.experimental import pallas as pl
from jax.experimental.pallas import tpu as pltpu

# ---------------------------------------------------------------------------
# Static problem sizes (from the PyTorch test fixture).
# ---------------------------------------------------------------------------
N = 8          # nodes
IN_CH = 3      # input features
HID = 16       # hidden channels
OUT_CH = 7     # multiclass_classification -> 7 classes

# Packed-constant slab layout (rows x 16 cols, zero padded).
_ROW_A0, _ROW_A1 = 0, N                              # A_hat       (cols 0:N)
_ROW_W1_0, _ROW_W1_1 = N, N + IN_CH                  # W1          (cols 0:HID)
_ROW_B1 = N + IN_CH                                  # b1          (cols 0:HID)
_ROW_W2_0, _ROW_W2_1 = _ROW_B1 + 1, _ROW_B1 + 1 + HID  # W2        (cols 0:OUT_CH)
_ROW_B2 = _ROW_B1 + 1 + HID                          # b2          (cols 0:OUT_CH)
_SLAB_ROWS = _ROW_B2 + 1                             # 29
_SLAB_COLS = HID                                     # 16


def _gnn_kernel(const_ref, x_ref, o_ref):
    """Fused two-layer GCN forward + log_softmax for one batch element.

    const_ref : (29, 16) packed [A_hat | W1 | b1 | W2 | b2] slab (resident)
    x_ref     : (1, N, IN_CH)  node features for this grid step
    o_ref     : (1, N, OUT_CH) log-probabilities
    """
    a = const_ref[_ROW_A0:_ROW_A1, 0:N]                 # (N, N) normalized adj
    b1 = const_ref[_ROW_B1:_ROW_B1 + 1, :]              # (1, HID)
    w2 = const_ref[_ROW_W2_0:_ROW_W2_1, 0:OUT_CH]       # (HID, OUT_CH)
    b2 = const_ref[_ROW_B2:_ROW_B2 + 1, 0:OUT_CH]       # (1, OUT_CH)
    x = x_ref[0]                                        # (N, IN_CH)

    # --- conv1: A_hat @ (X @ W1) + b1, then ReLU --------------------------
    # X @ W1 has K = 3 -> cheaper as a 3-term VPU broadcast-MAC than an MXU pass.
    xw = (x[:, 0:1] * const_ref[_ROW_W1_0:_ROW_W1_0 + 1, :]
          + x[:, 1:2] * const_ref[_ROW_W1_0 + 1:_ROW_W1_0 + 2, :]
          + x[:, 2:3] * const_ref[_ROW_W1_0 + 2:_ROW_W1_0 + 3, :])   # (N, HID)
    h = jnp.dot(a, xw, preferred_element_type=jnp.float32)           # MXU #1
    h = jnp.maximum(h + b1, 0.0)

    # --- conv2: z = A_hat @ (H @ W2) + b2 (natural order, fewer FLOPs) ----
    hw = jnp.dot(h, w2, preferred_element_type=jnp.float32)          # MXU #2 (N, OUT_CH)
    z = jnp.dot(a, hw, preferred_element_type=jnp.float32) + b2      # MXU #3

    # --- multiclass_classification + log_probs -> log_softmax(dim=-1) -----
    z = z - jnp.max(z, axis=-1, keepdims=True)
    lse = jnp.log(jnp.sum(jnp.exp(z), axis=-1, keepdims=True))
    o_ref[0] = z - lse


@jax.jit
def gnn_forward(const_slab, x_batch):
    """Batched hot path: one pallas_call over a leading batch grid axis."""
    b = x_batch.shape[0]
    return pl.pallas_call(
        _gnn_kernel,
        out_shape=jax.ShapeDtypeStruct((b, N, OUT_CH), jnp.float32),
        grid=(b,),
        in_specs=[
            # Constants: same block every step -> stays resident in VMEM.
            pl.BlockSpec((_SLAB_ROWS, _SLAB_COLS), lambda i: (0, 0)),
            pl.BlockSpec((1, N, IN_CH), lambda i: (i, 0, 0)),
        ],
        out_specs=pl.BlockSpec((1, N, OUT_CH), lambda i: (i, 0, 0)),
        compiler_params=pltpu.CompilerParams(
            dimension_semantics=("parallel",)),   # lets v7x split across 2 TCs
    )(const_slab, x_batch)


def build_normalized_adj(edge_index, *, n):
    """A_hat = D^-1/2 (A + I) D^-1/2, built once for the static graph."""
    src, dst = edge_index[0], edge_index[1]
    src_oh = jax.nn.one_hot(src, n, dtype=jnp.float32)   # (E, N)
    dst_oh = jax.nn.one_hot(dst, n, dtype=jnp.float32)   # (E, N)
    adj = dst_oh.T @ src_oh                              # adj[dst, src] = 1
    adj = adj + jnp.eye(n, dtype=jnp.float32)            # self loops
    deg = jnp.sum(adj, axis=1)
    dinv = jnp.where(deg > 0, jax.lax.rsqrt(deg), 0.0)
    return adj * dinv[:, None] * dinv[None, :]


def pack_constants(a_hat, w1, b1, w2, b2):
    """Pack all static operands into one zero-padded (29, 16) f32 slab."""
    slab = jnp.zeros((_SLAB_ROWS, _SLAB_COLS), jnp.float32)
    slab = slab.at[_ROW_A0:_ROW_A1, 0:N].set(a_hat)
    slab = slab.at[_ROW_W1_0:_ROW_W1_1, :].set(w1)
    slab = slab.at[_ROW_B1, :].set(b1.reshape(-1))
    slab = slab.at[_ROW_W2_0:_ROW_W2_1, 0:OUT_CH].set(w2)
    slab = slab.at[_ROW_B2, 0:OUT_CH].set(b2.reshape(-1))
    return slab


if __name__ == "__main__":
    key = jax.random.PRNGKey(0)
    k_x, k_w1, k_b1, k_w2, k_b2, k_p = jax.random.split(key, 6)

    # Graph fixture matching the PyTorch test (static per-call).
    edge_index = jnp.array(
        [[0, 1, 1, 2, 2, 3, 3, 4, 4, 5, 5, 6, 6, 7],
         [1, 0, 2, 1, 3, 2, 4, 3, 5, 4, 6, 5, 7, 6]], dtype=jnp.int32)
    batch = jnp.array([0, 0, 0, 1, 1, 2, 2, 2], dtype=jnp.int32)           # unused (node-level)
    edge_label_index = jnp.array([[0, 1, 2], [3, 4, 5]], dtype=jnp.int32)  # unused (node-level)

    # Batched node features: B independent (8, 3) feature matrices over the
    # same graph, processed in one gridded pallas_call.
    B = 4
    x_batch = jax.random.normal(k_x, (B, N, IN_CH), dtype=jnp.float32)

    # Deterministic parameter init (glorot-uniform weights, small random bias).
    lim1 = (6.0 / (IN_CH + HID)) ** 0.5
    lim2 = (6.0 / (HID + OUT_CH)) ** 0.5
    w1 = jax.random.uniform(k_w1, (IN_CH, HID), jnp.float32, -lim1, lim1)
    b1 = 0.1 * jax.random.normal(k_b1, (1, HID), dtype=jnp.float32)
    w2 = jax.random.uniform(k_w2, (HID, OUT_CH), jnp.float32, -lim2, lim2)
    b2 = 0.1 * jax.random.normal(k_b2, (1, OUT_CH), dtype=jnp.float32)
    # self.param = nn.Parameter(torch.empty(1)) — unused in forward; kept for parity.
    _param = jax.random.normal(k_p, (1,), dtype=jnp.float32)

    # One-time prep: normalized adjacency + packed constant slab.
    a_hat = build_normalized_adj(edge_index, n=N)
    const_slab = jax.block_until_ready(pack_constants(a_hat, w1, b1, w2, b2))

    out = jax.block_until_ready(gnn_forward(const_slab, x_batch))
    assert out.shape == (B, N, OUT_CH)

    # Pure-JAX reference (unpacked formulation), vmapped over the batch.
    def ref_one(xx):
        h = jnp.maximum(a_hat @ (xx @ w1) + b1, 0.0)
        z = a_hat @ (h @ w2) + b2
        return jax.nn.log_softmax(z, axis=-1)

    ref = jax.vmap(ref_one)(x_batch)
    assert jnp.allclose(out, ref, atol=1e-5, rtol=1e-5)
    # Rows of log_softmax must exp-sum to 1.
    assert jnp.allclose(jnp.sum(jnp.exp(out), axis=-1), 1.0, atol=1e-5)
    print("KERNEL_OK")
</pallas_src>

<mosaic_0001>
module attributes {stable_mosaic.version = 11 : i64} {
  func.func @_gnn_kernel(%arg0: i32, %arg1: memref<29x16xf32, #tpu.memory_space<vmem>>, %arg2: memref<1x8x3xf32, #tpu.memory_space<vmem>>, %arg3: memref<1x8x7xf32, #tpu.memory_space<vmem>>) attributes {dimension_semantics = [#tpu.dimension_semantics<parallel>], iteration_bounds = array<i64: 4>, scalar_prefetch = 0 : i64, scratch_operands = 0 : i64, tpu.core_type = #tpu.core_type<tc>, window_params = [{pipeline_mode = #tpu.pipeline_mode<synchronous>, transform_indices = @transform_0, window_bounds = array<i64: 29, 16>}, {transform_indices = @transform_1, window_bounds = array<i64: 1, 8, 3>}, {transform_indices = @transform_2, window_bounds = array<i64: 1, 8, 7>}]} {
    %c0 = arith.constant 0 : index
    %c0_0 = arith.constant 0 : index
    %0 = vector.load %arg1[%c0, %c0_0] : memref<29x16xf32, #tpu.memory_space<vmem>>, vector<8x8xf32>
    %c11 = arith.constant 11 : index
    %c0_1 = arith.constant 0 : index
    %1 = vector.load %arg1[%c11, %c0_1] : memref<29x16xf32, #tpu.memory_space<vmem>>, vector<1x16xf32>
    %c12 = arith.constant 12 : index
    %c0_2 = arith.constant 0 : index
    %2 = vector.load %arg1[%c12, %c0_2] : memref<29x16xf32, #tpu.memory_space<vmem>>, vector<16x7xf32>
    %c28 = arith.constant 28 : index
    %c0_3 = arith.constant 0 : index
    %3 = vector.load %arg1[%c28, %c0_3] : memref<29x16xf32, #tpu.memory_space<vmem>>, vector<1x7xf32>
    %c0_4 = arith.constant 0 : index
    %c0_5 = arith.constant 0 : index
    %c0_6 = arith.constant 0 : index
    %4 = vector.load %arg2[%c0_4, %c0_5, %c0_6] : memref<1x8x3xf32, #tpu.memory_space<vmem>>, vector<1x8x3xf32>
    %5 = vector.shape_cast %4 : vector<1x8x3xf32> to vector<8x3xf32>
    %6 = vector.extract_strided_slice %5 {offsets = [0, 0], sizes = [8, 1], strides = [1, 1]} : vector<8x3xf32> to vector<8x1xf32>
    %c8 = arith.constant 8 : index
    %c0_7 = arith.constant 0 : index
    %7 = vector.load %arg1[%c8, %c0_7] : memref<29x16xf32, #tpu.memory_space<vmem>>, vector<1x16xf32>
    %8 = vector.broadcast %6 : vector<8x1xf32> to vector<8x16xf32>
    %9 = vector.broadcast %7 : vector<1x16xf32> to vector<8x16xf32>
    %10 = arith.mulf %8, %9 : vector<8x16xf32>
    %11 = vector.extract_strided_slice %5 {offsets = [0, 1], sizes = [8, 1], strides = [1, 1]} : vector<8x3xf32> to vector<8x1xf32>
    %c9 = arith.constant 9 : index
    %c0_8 = arith.constant 0 : index
    %12 = vector.load %arg1[%c9, %c0_8] : memref<29x16xf32, #tpu.memory_space<vmem>>, vector<1x16xf32>
    %13 = vector.broadcast %11 : vector<8x1xf32> to vector<8x16xf32>
    %14 = vector.broadcast %12 : vector<1x16xf32> to vector<8x16xf32>
    %15 = arith.mulf %13, %14 : vector<8x16xf32>
    %16 = arith.addf %10, %15 : vector<8x16xf32>
    %17 = vector.extract_strided_slice %5 {offsets = [0, 2], sizes = [8, 1], strides = [1, 1]} : vector<8x3xf32> to vector<8x1xf32>
    %c10 = arith.constant 10 : index
    %c0_9 = arith.constant 0 : index
    %18 = vector.load %arg1[%c10, %c0_9] : memref<29x16xf32, #tpu.memory_space<vmem>>, vector<1x16xf32>
    %19 = vector.broadcast %17 : vector<8x1xf32> to vector<8x16xf32>
    %20 = vector.broadcast %18 : vector<1x16xf32> to vector<8x16xf32>
    %21 = arith.mulf %19, %20 : vector<8x16xf32>
    %22 = arith.addf %16, %21 : vector<8x16xf32>
    %cst = arith.constant dense<0.000000e+00> : vector<8x16xf32>
    %23 = tpu.matmul %0, %22, %cst {dimension_numbers = #tpu.dot_dimension_numbers<[1], [0], [0], [1], [0, 0, 1, 1], [], []>} : vector<8x8xf32>, vector<8x16xf32>, vector<8x16xf32> -> vector<8x16xf32>
    %24 = vector.broadcast %1 : vector<1x16xf32> to vector<8x16xf32>
    %25 = arith.addf %23, %24 : vector<8x16xf32>
    %cst_10 = arith.constant 0.000000e+00 : f32
    %26 = vector.broadcast %cst_10 : f32 to vector<8x16xf32>
    %27 = arith.maximumf %25, %26 : vector<8x16xf32>
    %cst_11 = arith.constant dense<0.000000e+00> : vector<8x7xf32>
    %28 = tpu.matmul %27, %2, %cst_11 {dimension_numbers = #tpu.dot_dimension_numbers<[1], [0], [0], [1], [0, 0, 1, 1], [], []>} : vector<8x16xf32>, vector<16x7xf32>, vector<8x7xf32> -> vector<8x7xf32>
    %cst_12 = arith.constant dense<0.000000e+00> : vector<8x7xf32>
    %29 = tpu.matmul %0, %28, %cst_12 {dimension_numbers = #tpu.dot_dimension_numbers<[1], [0], [0], [1], [0, 0, 1, 1], [], []>} : vector<8x8xf32>, vector<8x7xf32>, vector<8x7xf32> -> vector<8x7xf32>
    %30 = vector.broadcast %3 : vector<1x7xf32> to vector<8x7xf32>
    %31 = arith.addf %29, %30 : vector<8x7xf32>
    %cst_13 = arith.constant dense<0xFF800000> : vector<8xf32>
    %32 = vector.multi_reduction <maximumf>, %31, %cst_13 [1] : vector<8x7xf32> to vector<8xf32>
    %33 = vector.shape_cast %32 : vector<8xf32> to vector<8x1xf32>
    %34 = vector.broadcast %33 : vector<8x1xf32> to vector<8x7xf32>
    %35 = arith.subf %31, %34 : vector<8x7xf32>
    %36 = math.exp %35 : vector<8x7xf32>
    %cst_14 = arith.constant dense<0.000000e+00> : vector<8xf32>
    %37 = vector.multi_reduction <add>, %36, %cst_14 [1] : vector<8x7xf32> to vector<8xf32>
    %38 = vector.shape_cast %37 : vector<8xf32> to vector<8x1xf32>
    %39 = math.log %38 : vector<8x1xf32>
    %40 = vector.broadcast %39 : vector<8x1xf32> to vector<8x7xf32>
    %41 = arith.subf %35, %40 : vector<8x7xf32>
    %c0_15 = arith.constant 0 : index
    %c0_16 = arith.constant 0 : index
    %c0_17 = arith.constant 0 : index
    %42 = vector.load %arg3[%c0_15, %c0_16, %c0_17] : memref<1x8x7xf32, #tpu.memory_space<vmem>>, vector<1x8x7xf32>
    %43 = vector.shape_cast %42 : vector<1x8x7xf32> to vector<8x7xf32>
    %44 = vector.shape_cast %41 : vector<8x7xf32> to vector<1x8x7xf32>
    tpu.vector_store %arg3[%c0_15, %c0_16, %c0_17], %44 {strides = array<i32>} : memref<1x8x7xf32, #tpu.memory_space<vmem>>, vector<1x8x7xf32>,
    return
  }
  func.func @transform_0(%arg0: i32) -> (i32, i32) {
    %c0_i32 = arith.constant 0 : i32
    %c0_i32_0 = arith.constant 0 : i32
    %c0_i32_1 = arith.constant 0 : i32
    return %c0_i32, %c0_i32_0 : i32, i32
  }
  func.func @transform_1(%arg0: i32) -> (i32, i32, i32) {
    %c0_i32 = arith.constant 0 : i32
    %c0_i32_0 = arith.constant 0 : i32
    %c0_i32_1 = arith.constant 0 : i32
    return %arg0, %c0_i32, %c0_i32_0 : i32, i32, i32
  }
  func.func @transform_2(%arg0: i32) -> (i32, i32, i32) {
    %c0_i32 = arith.constant 0 : i32
    %c0_i32_0 = arith.constant 0 : i32
    %c0_i32_1 = arith.constant 0 : i32
    return %arg0, %c0_i32, %c0_i32_0 : i32, i32, i32
  }
}

</mosaic_0001>

<llo_original>
// kernel: gnn_forward.1
$region0: #{gnn_forward.1}
  #allocation0 [shape = 'u32[]', space=smem, size = 0x4, offset = 0x4, fixed_abs, tag = 'smem constant byte address 0x4 - core index']
  #allocation1 [shape = 'u32[144,128]{1,0:T(1,128)}', space=vmem, size = 0x12000, scoped, tag = 'internal scratch']
  %s0 = inlined_call_operand.vmem [shape: f32[29,16], index: 0, kind: input, shape index: {}]
  %s1 = inlined_call_operand.vmem [shape: f32[4,8,3], index: 1, kind: input, shape index: {}]
  %s2 = inlined_call_operand.vmem [shape: f32[4,8,7], index: 2, kind: output, shape index: {}]
  %s3 = sld [smem:[#allocation0]]
  $region41: #{gnn_forward.1} parent=0
    _
  %s5 = ssub.s32 1, %s3
  %s6 = scalar_select 0, %s5, %s3
  loop: start=0, step=1, limit=6
  $region2: #{gnn_forward.1} parent=0 // loop_pre_header
    _
  $region3: #{gnn_forward.1} parent=0 // loop_header
    %s8 = sphi 0, %s12
    %p9 = scmp.ge.s32.totalorder %s8, 6
    %s16 = sphi 0, %s16
    %s18 = sphi 0, %s16
    %s19 = sphi 0, %s18
    %s33 = sphi 0, %s19
    %s39 = sphi 0, %s41
    %s42 = sphi 0, %s39
    %s43 = sphi 0, %s42
    %s59 = sphi 0, %s43
    %s65 = sphi 0, %s67
    %s68 = sphi 0, %s65
    %s69 = sphi 0, %s68
    %s85 = sphi 0, %s69
  $region4: #{gnn_forward.1} parent=0 // loop_header_branch
    %11 = sbr.rel (%p9) target = $region8
  $region5: #{gnn_forward.1} parent=0 // loop_body
    %s13 = ssub.s32 %s8, 1
    %s14 = ssub.s32 %s8, 2
    %s15 = sadd.s32 %s8, 1
    %s17 = sadd.s32 %s16, 1
    %p20 = scmp.eq.s32.totalorder %s8, 3
    %p21 = scmp.ne.s32.totalorder %s16, %s18
    %p22 = scmp.eq.s32.totalorder %s8, 0
    %p23 = por %p21, %p22
    %p24 = scmp.ne.s32.totalorder %s16, %s18
    %p25 = scmp.eq.s32.totalorder %s13, 3
    %p26 = por %p24, %p25
    %p27 = scmp.ne.s32.totalorder %s18, %s19
    %p28 = scmp.eq.s32.totalorder %s13, 0
    %p29 = por %p27, %p28
    %p30 = scmp.ne.s32.totalorder %s18, %s19
    %p31 = scmp.eq.s32.totalorder %s14, 3
    %p32 = por %p30, %p31
    %p34 = scmp.ne.s32.totalorder %s19, %s33
    %p35 = scmp.eq.s32.totalorder %s14, 0
    %p36 = por %p34, %p35
    %s37 = ssub.s32 %s8, %s15
    %p38 = scmp.eq.s32.totalorder %s37, 0
    %s40 = sadd.s32 %s39, 1
    %s41 = scalar_select %p38, %s39, %s40
    %p44 = pneg %p38
    %p45 = scmp.eq.s32.totalorder %s8, 3
    %p46 = por %p44, %p45
    %p47 = scmp.ne.s32.totalorder %s39, %s42
    %p48 = scmp.eq.s32.totalorder %s8, 0
    %p49 = por %p47, %p48
    %p50 = scmp.ne.s32.totalorder %s39, %s42
    %p51 = scmp.eq.s32.totalorder %s13, 3
    %p52 = por %p50, %p51
    %p53 = scmp.ne.s32.totalorder %s42, %s43
    %p54 = scmp.eq.s32.totalorder %s13, 0
    %p55 = por %p53, %p54
    %p56 = scmp.ne.s32.totalorder %s42, %s43
    %p57 = scmp.eq.s32.totalorder %s14, 3
    %p58 = por %p56, %p57
    %p60 = scmp.ne.s32.totalorder %s43, %s59
    %p61 = scmp.eq.s32.totalorder %s14, 0
    %p62 = por %p60, %p61
    %s63 = ssub.s32 %s8, %s15
    %p64 = scmp.eq.s32.totalorder %s63, 0
    %s66 = sadd.s32 %s65, 1
    %s67 = scalar_select %p64, %s65, %s66
    %p70 = pneg %p64
    %p71 = scmp.eq.s32.totalorder %s8, 3
    %p72 = por %p70, %p71
    %p73 = scmp.ne.s32.totalorder %s65, %s68
    %p74 = scmp.eq.s32.totalorder %s8, 0
    %p75 = por %p73, %p74
    %p76 = scmp.ne.s32.totalorder %s65, %s68
    %p77 = scmp.eq.s32.totalorder %s13, 3
    %p78 = por %p76, %p77
    %p79 = scmp.ne.s32.totalorder %s68, %s69
    %p80 = scmp.eq.s32.totalorder %s13, 0
    %p81 = por %p79, %p80
    %p82 = scmp.ne.s32.totalorder %s68, %s69
    %p83 = scmp.eq.s32.totalorder %s14, 3
    %p84 = por %p82, %p83
    %p86 = scmp.ne.s32.totalorder %s69, %s85
    %p87 = scmp.eq.s32.totalorder %s14, 0
    %p88 = por %p86, %p87
    %p89 = scmp.le.s32.totalorder 1, %s8
    %p90 = scmp.lt.s32.totalorder %s8, 5
    %p91 = pnand %p89, %p90
    %p92 = pneg %p91
    // Predicated region
    $region9: #{gnn_forward.1} parent=5 // pred_check
      _
    $region10: #{gnn_forward.1} parent=5 // pred_check_branch
      %94 = sbr.rel (%p91) target = $region12
    $region11: #{gnn_forward.1} parent=5 // pred_region
      %s95 = ssub.s32 %s8, 1
      // Predicated region
      $region13: #{gnn_forward.1} parent=11 // pred_check
        %p96 = pneg %p29
      $region14: #{gnn_forward.1} parent=11 // pred_check_branch
        %98 = sbr.rel (%p96) target = $region16
      $region15: #{gnn_forward.1} parent=11 // pred_region
        _
      $region16: #{gnn_forward.1} parent=11 // pred_fallthru
        _
    $region12: #{gnn_forward.1} parent=5 // pred_fallthru
      _
    %p99 = scmp.lt.s32.totalorder %s8, 4
    // Predicated region
    $region17: #{gnn_forward.1} parent=5 // pred_check
      %p100 = pneg %p99
    $region18: #{gnn_forward.1} parent=5 // pred_check_branch
      %102 = sbr.rel (%p100) target = $region20
    $region19: #{gnn_forward.1} parent=5 // pred_region
      // Predicated region
      $region21: #{gnn_forward.1} parent=19 // pred_check
        %p103 = pneg %p49
      $region22: #{gnn_forward.1} parent=19 // pred_check_branch
        %105 = sbr.rel (%p103) target = $region24
      $region23: #{gnn_forward.1} parent=19 // pred_region
        %p106 = scmp.lt.s32.totalorder %s8, 3
        %s107 = scalar_select %p106, %s8, 3
        %s108 = smul.addr %s107, 8
        %s109 = scalar_lea.vmem %s1, %s108
      $region24: #{gnn_forward.1} parent=19 // pred_fallthru
        _
    $region20: #{gnn_forward.1} parent=5 // pred_fallthru
      _
    %p110 = scmp.le.s32.totalorder 1, %s8
    %p111 = scmp.lt.s32.totalorder %s8, 5
    %p112 = pnand %p110, %p111
    %p113 = pneg %p112
    // Predicated region
    $region25: #{gnn_forward.1} parent=5 // pred_check
      _
    $region26: #{gnn_forward.1} parent=5 // pred_check_branch
      %115 = sbr.rel (%p112) target = $region28
    $region27: #{gnn_forward.1} parent=5 // pred_region
      %s116 = ssub.s32 %s8, 1
      %p117 = pneg %p29
      %p118 = pneg %p26
      %p119 = scmp.lt.s32.totalorder %s13, 3
      %s120 = scalar_select %p119, %s13, 3
      %s121 = smul.addr %s120, 8
      %s122 = scalar_lea.vmem %s1, %s121
      %p123 = pneg %p55
      %p124 = pneg %p52
      %p125 = pneg %p81
      %p126 = pneg %p78
      %p127 = scmp.lt.s32.totalorder %s13, 3
      %s128 = scalar_select %p127, %s13, 3
      %s129 = smul.addr %s128, 8
      %s130 = scalar_lea.vmem %s2, %s129
      %p131 = scmp.lt.s32.totalorder %s13, 3
      %s132 = scalar_select %p131, %s13, 3
      %s133 = smul.addr %s132, 8
      %s134 = scalar_lea.vmem %s1, %s133
      %p135 = scmp.lt.s32.totalorder %s13, 3
      %s136 = scalar_select %p135, %s13, 3
      %s137 = smul.addr %s136, 8
      %s138 = scalar_lea.vmem %s2, %s137
      %v139 = vld [vmem:[%s0] sm:$0xff]
      %v140 = vld [vmem:[%s0 + $0xb] sm:$0x1]
      %v141 = vld [vmem:[%s0 + $0xc] sm:$0xff]
      %v142 = vld [vmem:[%s0 + $0x14] sm:$0xff]
      %v143 = vld [vmem:[%s0 + $0x1c] sm:$0x1]
      %v144 = vld [vmem:[%s134] sm:$0xff]
      %v145 = vld [vmem:[%s0 + $0x8] sm:$0x1]
      %147 = vset.pattern.permute.xlu0 0
      %148 = vperm.xlu0 %147, %v144
      %v149 = vpop.permute.xlu0 %148
      %v151 = vlaneseq
      %v152 = vshrl.u32 %v151, 7
      %v153 = vsub.s32 0, %v152
      %v154 = vrot.slane %v145, %v153
      %v155 = vmul.f32 %v149, %v154
      %v156 = vld [vmem:[%s0 + $0x9] sm:$0x1]
      %157 = vset.pattern.permute.xlu0 1
      %158 = vperm.xlu0 %157, %v144
      %v159 = vpop.permute.xlu0 %158
      %v161 = vlaneseq
      %v162 = vshrl.u32 %v161, 7
      %v163 = vsub.s32 0, %v162
      %v164 = vrot.slane %v156, %v163
      %v165 = vmul.f32 %v159, %v164
      %v166 = vadd.f32 %v155, %v165
      %v167 = vld [vmem:[%s0 + $0xa] sm:$0x1]
      %168 = vset.pattern.permute.xlu0 2
      %169 = vperm.xlu0 %168, %v144
      %v170 = vpop.permute.xlu0 %169
      %v172 = vlaneseq
      %v173 = vshrl.u32 %v172, 7
      %v174 = vsub.s32 0, %v173
      %v175 = vrot.slane %v167, %v174
      %v176 = vmul.f32 %v170, %v175
      %v177 = vadd.f32 %v166, %v176
      %v178 = vlaneseq
      %v179 = vshrl.u32 %v178, 7
      %v180 = vsub.s32 0, %v179
      %v181 = vrot.slane %v140, %v180
      %vm182 = vcmask 64512
      %v184 = vsel %vm182, %v139, 0
      %186 = vmatprep.subr.mxu0 0.0
      %187 = vmatpush1.msra.mxu0 %v177
      %188 = vmatprep.subr.mxu0 0.0
      %189 = vmatpush1.msra.mxu0 0.0
      %190 = vmatprep.subr.mxu0 0.0
      %191 = vmatpush1.msra.mxu0 0.0
      %192 = vmatprep.subr.mxu0 0.0
      %193 = vmatpush1.msra.mxu0 0.0
      %194 = vmatprep.subr.mxu0 0.0
      %195 = vmatpush1.msra.mxu0 0.0
      %196 = vmatprep.subr.mxu0 0.0
      %197 = vmatpush1.msra.mxu0 0.0
      %198 = vmatprep.subr.mxu0 0.0
      %199 = vmatpush1.msra.mxu0 0.0
      %200 = vmatprep.subr.mxu0 0.0
      %201 = vmatpush1.msra.mxu0 0.0
      %202 = vmatprep.subr.mxu0 0.0
      %203 = vmatpush1.msra.mxu0 0.0
      %204 = vmatprep.subr.mxu0 0.0
      %205 = vmatpush1.msra.mxu0 0.0
      %206 = vmatprep.subr.mxu0 0.0
      %207 = vmatpush1.msra.mxu0 0.0
      %208 = vmatprep.subr.mxu0 0.0
      %209 = vmatpush1.msra.mxu0 0.0
      %210 = vmatprep.subr.mxu0 0.0
      %211 = vmatpush1.msra.mxu0 0.0
      %212 = vmatprep.subr.mxu0 0.0
      %213 = vmatpush1.msra.mxu0 0.0
      %214 = vmatprep.subr.mxu0 0.0
      %215 = vmatpush1.msra.mxu0 0.0
      %216 = vmatprep.subr.mxu0 0.0
      %217 = vmatpush1.msra.mxu0 0.0
      %218 = vmatprep.subr.mxu0 0.0
      %219 = vmatpush1.msra.mxu0 0.0
      %220 = vmatprep.subr.mxu0 0.0
      %221 = vmatpush1.msra.mxu0 0.0
      %222 = vmatprep.subr.mxu0 0.0
      %223 = vmatpush1.msra.mxu0 0.0
      %224 = vmatprep.subr.mxu0 0.0
      %225 = vmatpush1.msra.mxu0 0.0
      %226 = vmatprep.subr.mxu0 0.0
      %227 = vmatpush1.msra.mxu0 0.0
      %228 = vmatprep.subr.mxu0 0.0
      %229 = vmatpush1.msra.mxu0 0.0
      %230 = vmatprep.subr.mxu0 0.0
      %231 = vmatpush1.msra.mxu0 0.0
      %232 = vmatprep.subr.mxu0 0.0
      %233 = vmatpush1.msra.mxu0 0.0
      %234 = vmatprep.subr.mxu0 0.0
      %235 = vmatpush1.msra.mxu0 0.0
      %236 = vmatprep.subr.mxu0 0.0
      %237 = vmatpush1.msra.mxu0 0.0
      %238 = vmatprep.subr.mxu0 0.0
      %239 = vmatpush1.msra.mxu0 0.0
      %240 = vmatprep.subr.mxu0 0.0
      %241 = vmatpush1.msra.mxu0 0.0
      %242 = vmatprep.subr.mxu0 0.0
      %243 = vmatpush1.msra.mxu0 0.0
      %244 = vmatprep.subr.mxu0 0.0
      %245 = vmatpush1.msra.mxu0 0.0
      %246 = vmatprep.subr.mxu0 0.0
      %247 = vmatpush1.msra.mxu0 0.0
      %248 = vmatprep.subr.mxu0 0.0
      %249 = vmatpush1.msra.mxu0 0.0
      %250 = vmatprep.mubr.f32.mxu0 0.0
      %251 = vmatmul.mubr.f32.gmra.mrb[0].mxu0 %v184
      %v252 = vpop.f32.mrb[0].mxu0
      %v253 = vadd.f32 %v181, %v252
      %v254 = vpop.f32.mrb[0].mxu0
      %255 = vdwg.mxu0
      %v256 = vmax.f32 %v253, 0.0
      %vm257 = vcmask 130048
      %v259 = vsel %vm257, %v256, 0
      %261 = vmatprep.subr.mxu0 0.0
      %262 = vmatpush1.msra.mxu0 %v141
      %263 = vmatprep.subr.mxu0 0.0
      %264 = vmatpush1.msra.mxu0 %v142
      %265 = vmatprep.subr.mxu0 0.0
      %266 = vmatpush1.msra.mxu0 0.0
      %267 = vmatprep.subr.mxu0 0.0
      %268 = vmatpush1.msra.mxu0 0.0
      %269 = vmatprep.subr.mxu0 0.0
      %270 = vmatpush1.msra.mxu0 0.0
      %271 = vmatprep.subr.mxu0 0.0
      %272 = vmatpush1.msra.mxu0 0.0
      %273 = vmatprep.subr.mxu0 0.0
      %274 = vmatpush1.msra.mxu0 0.0
      %275 = vmatprep.subr.mxu0 0.0
      %276 = vmatpush1.msra.mxu0 0.0
      %277 = vmatprep.subr.mxu0 0.0
      %278 = vmatpush1.msra.mxu0 0.0
      %279 = vmatprep.subr.mxu0 0.0
      %280 = vmatpush1.msra.mxu0 0.0
      %281 = vmatprep.subr.mxu0 0.0
      %282 = vmatpush1.msra.mxu0 0.0
      %283 = vmatprep.subr.mxu0 0.0
      %284 = vmatpush1.msra.mxu0 0.0
      %285 = vmatprep.subr.mxu0 0.0
      %286 = vmatpush1.msra.mxu0 0.0
      %287 = vmatprep.subr.mxu0 0.0
      %288 = vmatpush1.msra.mxu0 0.0
      %289 = vmatprep.subr.mxu0 0.0
      %290 = vmatpush1.msra.mxu0 0.0
      %291 = vmatprep.subr.mxu0 0.0
      %292 = vmatpush1.msra.mxu0 0.0
      %293 = vmatprep.subr.mxu0 0.0
      %294 = vmatpush1.msra.mxu0 0.0
      %295 = vmatprep.subr.mxu0 0.0
      %296 = vmatpush1.msra.mxu0 0.0
      %297 = vmatprep.subr.mxu0 0.0
      %298 = vmatpush1.msra.mxu0 0.0
      %299 = vmatprep.subr.mxu0 0.0
      %300 = vmatpush1.msra.mxu0 0.0
      %301 = vmatprep.subr.mxu0 0.0
      %302 = vmatpush1.msra.mxu0 0.0
      %303 = vmatprep.subr.mxu0 0.0
      %304 = vmatpush1.msra.mxu0 0.0
      %305 = vmatprep.subr.mxu0 0.0
      %306 = vmatpush1.msra.mxu0 0.0
      %307 = vmatprep.subr.mxu0 0.0
      %308 = vmatpush1.msra.mxu0 0.0
      %309 = vmatprep.subr.mxu0 0.0
      %310 = vmatpush1.msra.mxu0 0.0
      %311 = vmatprep.subr.mxu0 0.0
      %312 = vmatpush1.msra.mxu0 0.0
      %313 = vmatprep.subr.mxu0 0.0
      %314 = vmatpush1.msra.mxu0 0.0
      %315 = vmatprep.subr.mxu0 0.0
      %316 = vmatpush1.msra.mxu0 0.0
      %317 = vmatprep.subr.mxu0 0.0
      %318 = vmatpush1.msra.mxu0 0.0
      %319 = vmatprep.subr.mxu0 0.0
      %320 = vmatpush1.msra.mxu0 0.0
      %321 = vmatprep.subr.mxu0 0.0
      %322 = vmatpush1.msra.mxu0 0.0
      %323 = vmatprep.subr.mxu0 0.0
      %324 = vmatpush1.msra.mxu0 0.0
      %325 = vmatprep.mubr.f32.mxu0 0.0
      %326 = vmatmul.mubr.f32.gmra.mrb[0].mxu0 %v259
      %v327 = vpop.f32.mrb[0].mxu0
      %v328 = vadd.f32 0.0, %v327
      %v329 = vpop.f32.mrb[0].mxu0
      %330 = vdwg.mxu0
      %v331 = vlaneseq
      %v332 = vshrl.u32 %v331, 7
      %v333 = vsub.s32 0, %v332
      %v334 = vrot.slane %v143, %v333
      %335 = vmatprep.subr.mxu0 0.0
      %336 = vmatpush1.msra.mxu0 %v328
      %337 = vmatprep.subr.mxu0 0.0
      %338 = vmatpush1.msra.mxu0 0.0
      %339 = vmatprep.subr.mxu0 0.0
      %340 = vmatpush1.msra.mxu0 0.0
      %341 = vmatprep.subr.mxu0 0.0
      %342 = vmatpush1.msra.mxu0 0.0
      %343 = vmatprep.subr.mxu0 0.0
      %344 = vmatpush1.msra.mxu0 0.0
      %345 = vmatprep.subr.mxu0 0.0
      %346 = vmatpush1.msra.mxu0 0.0
      %347 = vmatprep.subr.mxu0 0.0
      %348 = vmatpush1.msra.mxu0 0.0
      %349 = vmatprep.subr.mxu0 0.0
      %350 = vmatpush1.msra.mxu0 0.0
      %351 = vmatprep.subr.mxu0 0.0
      %352 = vmatpush1.msra.mxu0 0.0
      %353 = vmatprep.subr.mxu0 0.0
      %354 = vmatpush1.msra.mxu0 0.0
      %355 = vmatprep.subr.mxu0 0.0
      %356 = vmatpush1.msra.mxu0 0.0
      %357 = vmatprep.subr.mxu0 0.0
      %358 = vmatpush1.msra.mxu0 0.0
      %359 = vmatprep.subr.mxu0 0.0
      %360 = vmatpush1.msra.mxu0 0.0
      %361 = vmatprep.subr.mxu0 0.0
      %362 = vmatpush1.msra.mxu0 0.0
      %363 = vmatprep.subr.mxu0 0.0
      %364 = vmatpush1.msra.mxu0 0.0
      %365 = vmatprep.subr.mxu0 0.0
      %366 = vmatpush1.msra.mxu0 0.0
      %367 = vmatprep.subr.mxu0 0.0
      %368 = vmatpush1.msra.mxu0 0.0
      %369 = vmatprep.subr.mxu0 0.0
      %370 = vmatpush1.msra.mxu0 0.0
      %371 = vmatprep.subr.mxu0 0.0
      %372 = vmatpush1.msra.mxu0 0.0
      %373 = vmatprep.subr.mxu0 0.0
      %374 = vmatpush1.msra.mxu0 0.0
      %375 = vmatprep.subr.mxu0 0.0
      %376 = vmatpush1.msra.mxu0 0.0
      %377 = vmatprep.subr.mxu0 0.0
      %378 = vmatpush1.msra.mxu0 0.0
      %379 = vmatprep.subr.mxu0 0.0
      %380 = vmatpush1.msra.mxu0 0.0
      %381 = vmatprep.subr.mxu0 0.0
      %382 = vmatpush1.msra.mxu0 0.0
      %383 = vmatprep.subr.mxu0 0.0
      %384 = vmatpush1.msra.mxu0 0.0
      %385 = vmatprep.subr.mxu0 0.0
      %386 = vmatpush1.msra.mxu0 0.0
      %387 = vmatprep.subr.mxu0 0.0
      %388 = vmatpush1.msra.mxu0 0.0
      %389 = vmatprep.subr.mxu0 0.0
      %390 = vmatpush1.msra.mxu0 0.0
      %391 = vmatprep.subr.mxu0 0.0
      %392 = vmatpush1.msra.mxu0 0.0
      %393 = vmatprep.subr.mxu0 0.0
      %394 = vmatpush1.msra.mxu0 0.0
      %395 = vmatprep.subr.mxu0 0.0
      %396 = vmatpush1.msra.mxu0 0.0
      %397 = vmatprep.subr.mxu0 0.0
      %398 = vmatpush1.msra.mxu0 0.0
      %399 = vmatprep.mubr.f32.mxu0 0.0
      %400 = vmatmul.mubr.f32.gmra.mrb[0].mxu0 %v184
      %v401 = vpop.f32.mrb[0].mxu0
      %v402 = vadd.f32 %v334, %v401
      %v403 = vpop.f32.mrb[0].mxu0
      %404 = vdwg.mxu0
      %vm405 = vcmask 56320
      %v406 = vsel %vm405, %v402, -inf
      %407 = vmax.xlane.f32.xlu0 %v406
      %v408 = vpop.xlane.xlu0 %407
      %v409 = vsub.f32 %v402, %v408
      %v410 = vmul.f32 %v409, 1.442695
      %v411 = vpow.pop %v410
      %v412 = vsel %vm405, %v411, 0.0
      %413 = vadd.xlane.f32.xlu0 %v412
      %v414 = vpop.xlane.xlu0 %413
      %v415 = vlog2.pop %v414
      %v416 = vmul.f32 %v415, 0.6931472
      %v417 = vsub.f32 %v409, %v416
      %418 = vst.msk [vmem:[%s138] sm:$0xff] %vm405, %v417
      %p419 = scmp.lt.s32.totalorder %s13, 3
      %s420 = scalar_select %p419, %s13, 3
      %s421 = smul.addr %s420, 8
      %s422 = scalar_lea.vmem %s2, %s421
      // Predicated region
      $region29: #{gnn_forward.1} parent=27 // pred_check
        %p423 = pneg %p78
      $region30: #{gnn_forward.1} parent=27 // pred_check_branch
        %425 = sbr.rel (%p423) target = $region32
      $region31: #{gnn_forward.1} parent=27 // pred_region
        _
      $region32: #{gnn_forward.1} parent=27 // pred_fallthru
        _
    $region28: #{gnn_forward.1} parent=5 // pred_fallthru
      _
    %p426 = scmp.le.s32.totalorder 2, %s8
    // Predicated region
    $region33: #{gnn_forward.1} parent=5 // pred_check
      %p427 = pneg %p426
    $region34: #{gnn_forward.1} parent=5 // pred_check_branch
      %429 = sbr.rel (%p427) target = $region36
    $region35: #{gnn_forward.1} parent=5 // pred_region
      %s430 = ssub.s32 %s8, 2
      // Predicated region
      $region37: #{gnn_forward.1} parent=35 // pred_check
        %p431 = pneg %p84
      $region38: #{gnn_forward.1} parent=35 // pred_check_branch
        %433 = sbr.rel (%p431) target = $region40
      $region39: #{gnn_forward.1} parent=35 // pred_region
        %p434 = scmp.lt.s32.totalorder %s14, 3
        %s435 = scalar_select %p434, %s14, 3
        %s436 = smul.addr %s435, 8
        %s437 = scalar_lea.vmem %s2, %s436
      $region40: #{gnn_forward.1} parent=35 // pred_fallthru
        _
    $region36: #{gnn_forward.1} parent=5 // pred_fallthru
      _
  $region6: #{gnn_forward.1} parent=0 // loop_footer
    %s12 = sadd.s32 1, %s8
  $region7: #{gnn_forward.1} parent=0 // loop_footer_branch
    %7 = sbr.rel target = $region3
  $region8: #{gnn_forward.1} parent=0 // loop_exit
    _

</llo_original>
